<compile_context>
chip_gen: v6e
topology: v6e:2x2x1
jax: 0.10.0
libtpu: 0.0.40
codegen_flags: <defaults>
</compile_context>

<pallas_src>
import jax
import jax.numpy as jnp
from jax.experimental import pallas as pl
from jax.experimental.pallas import tpu as pltpu


# ----------------------------- Pallas kernels -------------------------------

def xw1_kernel(x_ref, w1_ref, o_ref):
    """Row tile of X @ W1 (f32 accumulation, bf16 store)."""
    o_ref[...] = jnp.dot(
        x_ref[...], w1_ref[...],
        preferred_element_type=jnp.float32).astype(o_ref.dtype)


def gcn_layer1_kernel(a_ref, xw1_ref, b1_ref, w2_ref, hw2_ref):
    """Row tile: hw2 = relu(A_tile @ XW1 + b1) @ W2 (f32 accum, bf16 store)."""
    h = jnp.dot(a_ref[...], xw1_ref[...], preferred_element_type=jnp.float32)
    h = jnp.maximum(h + b1_ref[...], 0.0)
    # F.dropout(p=0.5): identity in eval mode.
    hw2_ref[...] = jnp.dot(
        h.astype(jnp.bfloat16), w2_ref[...],
        preferred_element_type=jnp.float32).astype(hw2_ref.dtype)


def gcn_layer2_kernel(a_ref, hw2_ref, b2_ref, o_ref):
    """Row tile: out = A_tile @ HW2 + b2 (f32 accum, bf16 store)."""
    out = jnp.dot(a_ref[...], hw2_ref[...], preferred_element_type=jnp.float32)
    o_ref[...] = (out + b2_ref[...]).astype(o_ref.dtype)


# ------------------------------ wrapper --------------------------------------

def _round_up(v, m):
    return ((v + m - 1) // m) * m


def _pad2(arr, shape):
    pads = [(0, s - d) for d, s in zip(arr.shape, shape)]
    return jnp.pad(arr, pads)


def _pick_row_tile(n_p):
    """Largest of (512, 256, 128) dividing n_p whose double-buffered bf16
    A row tile (2 * tm * n_p * 2 bytes) stays <= 8 MiB."""
    for tm in (512, 256, 128):
        if n_p % tm == 0 and 2 * (tm * n_p * 2) <= (8 << 20):
            return tm
    return 128


# Above v5e's 16 MiB scoped default, below v7x's 64 MiB physical VMEM.
_VMEM_LIMIT = 48 * 1024 * 1024


def gcn_dense_pallas(a_hat, x, w1, b1, w2, b2):
    """out = A_hat @ relu(A_hat @ (X@W1) + b1) @ W2 + b2, row-tiled Pallas."""
    n, f_in = x.shape
    hid = w1.shape[1]
    f_out = w2.shape[1]

    # 128-align every matmul dim.  N is A_hat's lane (last) dim, so n_p % 128
    # gives unmasked vld/vst on the A stream and full-width MXU passes; the
    # padding is zeros the MXU eats cheaply.
    n_p = _round_up(n, 128)
    f_in_p = _round_up(f_in, 128)
    hid_p = _round_up(hid, 128)
    f_out_p = _round_up(f_out, 128)
    tm = _pick_row_tile(n_p)
    n_tiles = n_p // tm

    # bf16 matmul operands (f32 accumulation inside the kernels); f32 biases.
    a_p = _pad2(a_hat, (n_p, n_p)).astype(jnp.bfloat16)
    x_p = _pad2(x, (n_p, f_in_p)).astype(jnp.bfloat16)
    w1_p = _pad2(w1, (f_in_p, hid_p)).astype(jnp.bfloat16)
    w2_p = _pad2(w2, (hid_p, f_out_p)).astype(jnp.bfloat16)
    b1_p = _pad2(b1.reshape(1, -1), (1, hid_p)).astype(jnp.float32)
    b2_p = _pad2(b2.reshape(1, -1), (1, f_out_p)).astype(jnp.float32)

    cparams = pltpu.CompilerParams(
        dimension_semantics=("parallel",),       # row axis -> 2 TCs on v7x
        vmem_limit_bytes=_VMEM_LIMIT)

    # ---- XW1 = X @ W1 (small, row-tiled) ------------------------------------
    xw1 = pl.pallas_call(
        xw1_kernel,
        out_shape=jax.ShapeDtypeStruct((n_p, hid_p), jnp.bfloat16),
        grid_spec=pltpu.PrefetchScalarGridSpec(
            num_scalar_prefetch=0,
            grid=(n_tiles,),
            in_specs=[
                pl.BlockSpec((tm, f_in_p), lambda i: (i, 0)),      # X row tile
                pl.BlockSpec((f_in_p, hid_p), lambda i: (0, 0)),   # W1 resident
            ],
            out_specs=pl.BlockSpec((tm, hid_p), lambda i: (i, 0)),
        ),
        compiler_params=cparams,
        cost_estimate=pl.CostEstimate(
            flops=2 * n_p * f_in_p * hid_p,
            transcendentals=0,
            bytes_accessed=2 * (n_p * f_in_p + f_in_p * hid_p + n_p * hid_p)),
    )(x_p, w1_p)

    # ---- HW2 = relu(A @ XW1 + b1) @ W2 (A row-tiled, double-buffered) -------
    hw2 = pl.pallas_call(
        gcn_layer1_kernel,
        out_shape=jax.ShapeDtypeStruct((n_p, f_out_p), jnp.bfloat16),
        grid_spec=pltpu.PrefetchScalarGridSpec(
            num_scalar_prefetch=0,
            grid=(n_tiles,),
            in_specs=[
                pl.BlockSpec((tm, n_p), lambda i: (i, 0)),         # A row tile
                pl.BlockSpec((n_p, hid_p), lambda i: (0, 0)),      # XW1 resident
                pl.BlockSpec((1, hid_p), lambda i: (0, 0)),        # b1
                pl.BlockSpec((hid_p, f_out_p), lambda i: (0, 0)),  # W2 resident
            ],
            out_specs=pl.BlockSpec((tm, f_out_p), lambda i: (i, 0)),
        ),
        compiler_params=cparams,
        cost_estimate=pl.CostEstimate(
            flops=2 * n_p * n_p * hid_p + 2 * n_p * hid_p * f_out_p,
            transcendentals=0,
            bytes_accessed=2 * (n_p * n_p + n_p * hid_p
                                + hid_p * f_out_p + n_p * f_out_p)
                           + 4 * hid_p),
    )(a_p, xw1, b1_p, w2_p)

    # ---- OUT = A @ HW2 + b2 (A row-tiled, double-buffered) ------------------
    out_p = pl.pallas_call(
        gcn_layer2_kernel,
        out_shape=jax.ShapeDtypeStruct((n_p, f_out_p), jnp.bfloat16),
        grid_spec=pltpu.PrefetchScalarGridSpec(
            num_scalar_prefetch=0,
            grid=(n_tiles,),
            in_specs=[
                pl.BlockSpec((tm, n_p), lambda i: (i, 0)),         # A row tile
                pl.BlockSpec((n_p, f_out_p), lambda i: (0, 0)),    # HW2 resident
                pl.BlockSpec((1, f_out_p), lambda i: (0, 0)),      # b2
            ],
            out_specs=pl.BlockSpec((tm, f_out_p), lambda i: (i, 0)),
        ),
        compiler_params=cparams,
        cost_estimate=pl.CostEstimate(
            flops=2 * n_p * n_p * f_out_p,
            transcendentals=0,
            bytes_accessed=2 * (n_p * n_p + 2 * n_p * f_out_p) + 4 * f_out_p),
    )(a_p, hw2, b2_p)

    return out_p[:n, :f_out].astype(jnp.float32)


# ------------------------------ JAX glue -------------------------------------

def normalized_adjacency(edge_index, num_nodes):
    """Dense D^-1/2 (A + I) D^-1/2 matching PyG's gcn_norm (add_self_loops=True).

    Note: assumes edge_index does not already contain self-loops (PyG's
    add_remaining_self_loops behavior); the test graph satisfies this.
    """
    src = jnp.concatenate([edge_index[0], jnp.arange(num_nodes)])
    dst = jnp.concatenate([edge_index[1], jnp.arange(num_nodes)])
    ones = jnp.ones(src.shape[0], dtype=jnp.float32)
    deg = jnp.zeros((num_nodes,), jnp.float32).at[dst].add(ones)
    dinv = jax.lax.rsqrt(deg)  # deg >= 1 because of self-loops
    norm = dinv[src] * dinv[dst]
    # message from src aggregated at dst:  A_hat[dst, src] = norm
    a_hat = jnp.zeros((num_nodes, num_nodes), jnp.float32).at[dst, src].add(norm)
    return a_hat


def glorot(key, shape):
    fan_in, fan_out = shape
    limit = jnp.sqrt(6.0 / (fan_in + fan_out))
    return jax.random.uniform(key, shape, jnp.float32, -limit, limit)


def init_gcn_params(key, in_channels, hidden_channels, out_channels):
    k1, k2 = jax.random.split(key)
    return {
        "w1": glorot(k1, (in_channels, hidden_channels)),
        "b1": jnp.zeros((hidden_channels,), jnp.float32),
        "w2": glorot(k2, (hidden_channels, out_channels)),
        "b2": jnp.zeros((out_channels,), jnp.float32),
    }


@jax.jit
def gcn_forward(params, x, edge_index):
    num_nodes = x.shape[0]
    a_hat = normalized_adjacency(edge_index, num_nodes)
    return gcn_dense_pallas(a_hat, x, params["w1"], params["b1"],
                            params["w2"], params["b2"])


def gcn_reference(params, x, edge_index):
    """Pure-JAX f32 reference for correctness checking."""
    a_hat = normalized_adjacency(edge_index, x.shape[0])
    h = jnp.maximum(a_hat @ (x @ params["w1"]) + params["b1"], 0.0)
    return a_hat @ (h @ params["w2"]) + params["b2"]


# ------------------------------- main -----------------------------------------

if __name__ == "__main__":
    N = 16            # number of nodes
    IN_CH = 8
    HIDDEN_CH = 32
    OUT_CH = 4

    key = jax.random.PRNGKey(0)
    kx, kp = jax.random.split(key)

    # deterministic node features
    x = jax.random.normal(kx, (N, IN_CH), jnp.float32)

    # deterministic bidirectional ring graph: i <-> (i+1) % N  -> E = 2N edges
    fwd_src = jnp.arange(N, dtype=jnp.int32)
    fwd_dst = (fwd_src + 1) % N
    edge_index = jnp.stack([
        jnp.concatenate([fwd_src, fwd_dst]),
        jnp.concatenate([fwd_dst, fwd_src]),
    ])  # shape (2, 32)

    params = init_gcn_params(kp, IN_CH, HIDDEN_CH, OUT_CH)

    out = gcn_forward(params, x, edge_index)
    jax.block_until_ready(out)

    assert out.shape == (N, OUT_CH), out.shape

    # Correctness vs. f32 reference (bf16 matmul operands => loose tolerance).
    ref = gcn_reference(params, x, edge_index)
    assert jnp.allclose(out, ref, atol=5e-2, rtol=5e-2), (
        float(jnp.max(jnp.abs(out - ref))))

    print("KERNEL_OK")
</pallas_src>

<mosaic_0001>
module attributes {stable_mosaic.version = 11 : i64} {
  func.func private @main(%arg0: i32) attributes {dimension_semantics = [#tpu.dimension_semantics<core_parallel>], iteration_bounds = array<i64: 2>, tpu.core_type = #tpu.core_type<sc_scalar_subcore>, window_params = []} {
    return
  }
}

module attributes {stable_mosaic.version = 11 : i64} {
  func.func private @main(%arg0: i32) attributes {dimension_semantics = [#tpu.dimension_semantics<core_parallel>], iteration_bounds = array<i64: 2>, tpu.core_type = #tpu.core_type<sc_scalar_subcore>, window_params = []} {
    return
  }
}

module attributes {stable_mosaic.version = 11 : i64} {
  func.func @xw1_kernel(%arg0: i32, %arg1: memref<128x128xbf16, #tpu.memory_space<vmem>>, %arg2: memref<128x128xbf16, #tpu.memory_space<vmem>>, %arg3: memref<128x128xbf16, #tpu.memory_space<vmem>>) attributes {dimension_semantics = [#tpu.dimension_semantics<parallel>], iteration_bounds = array<i64: 1>, scalar_prefetch = 0 : i64, scratch_operands = 0 : i64, tpu.core_type = #tpu.core_type<tc>, window_params = [{transform_indices = @transform_0, window_bounds = array<i64: 128, 128>}, {pipeline_mode = #tpu.pipeline_mode<synchronous>, transform_indices = @transform_1, window_bounds = array<i64: 128, 128>}, {transform_indices = @transform_2, window_bounds = array<i64: 128, 128>}]} {
    %c0 = arith.constant 0 : index
    %c0_0 = arith.constant 0 : index
    %0 = vector.load %arg1[%c0, %c0_0] : memref<128x128xbf16, #tpu.memory_space<vmem>>, vector<128x128xbf16>
    %c0_1 = arith.constant 0 : index
    %c0_2 = arith.constant 0 : index
    %1 = vector.load %arg2[%c0_1, %c0_2] : memref<128x128xbf16, #tpu.memory_space<vmem>>, vector<128x128xbf16>
    %cst = arith.constant dense<0.000000e+00> : vector<128x128xf32>
    %2 = tpu.matmul %0, %1, %cst {dimension_numbers = #tpu.dot_dimension_numbers<[1], [0], [0], [1], [0, 0, 1, 1], [], []>} : vector<128x128xbf16>, vector<128x128xbf16>, vector<128x128xf32> -> vector<128x128xf32>
    %3 = arith.truncf %2 : vector<128x128xf32> to vector<128x128xbf16>
    %c0_3 = arith.constant 0 : index
    %c0_4 = arith.constant 0 : index
    %4 = vector.load %arg3[%c0_3, %c0_4] : memref<128x128xbf16, #tpu.memory_space<vmem>>, vector<128x128xbf16>
    tpu.vector_store %arg3[%c0_3, %c0_4], %3 {strides = array<i32>} : memref<128x128xbf16, #tpu.memory_space<vmem>>, vector<128x128xbf16>,
    return
  }
  func.func @transform_0(%arg0: i32) -> (i32, i32) {
    %c0_i32 = arith.constant 0 : i32
    %c0_i32_0 = arith.constant 0 : i32
    return %arg0, %c0_i32 : i32, i32
  }
  func.func @transform_1(%arg0: i32) -> (i32, i32) {
    %c0_i32 = arith.constant 0 : i32
    %c0_i32_0 = arith.constant 0 : i32
    %c0_i32_1 = arith.constant 0 : i32
    return %c0_i32, %c0_i32_0 : i32, i32
  }
  func.func @transform_2(%arg0: i32) -> (i32, i32) {
    %c0_i32 = arith.constant 0 : i32
    %c0_i32_0 = arith.constant 0 : i32
    return %arg0, %c0_i32 : i32, i32
  }
}

module attributes {stable_mosaic.version = 11 : i64} {
  func.func @gcn_layer1_kernel(%arg0: i32, %arg1: memref<128x128xbf16, #tpu.memory_space<vmem>>, %arg2: memref<128x128xbf16, #tpu.memory_space<vmem>>, %arg3: memref<1x128xf32, #tpu.memory_space<vmem>>, %arg4: memref<128x128xbf16, #tpu.memory_space<vmem>>, %arg5: memref<128x128xbf16, #tpu.memory_space<vmem>>) attributes {dimension_semantics = [#tpu.dimension_semantics<parallel>], iteration_bounds = array<i64: 1>, scalar_prefetch = 0 : i64, scratch_operands = 0 : i64, tpu.core_type = #tpu.core_type<tc>, window_params = [{transform_indices = @transform_0, window_bounds = array<i64: 128, 128>}, {pipeline_mode = #tpu.pipeline_mode<synchronous>, transform_indices = @transform_1, window_bounds = array<i64: 128, 128>}, {pipeline_mode = #tpu.pipeline_mode<synchronous>, transform_indices = @transform_2, window_bounds = array<i64: 1, 128>}, {pipeline_mode = #tpu.pipeline_mode<synchronous>, transform_indices = @transform_3, window_bounds = array<i64: 128, 128>}, {transform_indices = @transform_4, window_bounds = array<i64: 128, 128>}]} {
    %c0 = arith.constant 0 : index
    %c0_0 = arith.constant 0 : index
    %0 = vector.load %arg1[%c0, %c0_0] : memref<128x128xbf16, #tpu.memory_space<vmem>>, vector<128x128xbf16>
    %c0_1 = arith.constant 0 : index
    %c0_2 = arith.constant 0 : index
    %1 = vector.load %arg2[%c0_1, %c0_2] : memref<128x128xbf16, #tpu.memory_space<vmem>>, vector<128x128xbf16>
    %cst = arith.constant dense<0.000000e+00> : vector<128x128xf32>
    %2 = tpu.matmul %0, %1, %cst {dimension_numbers = #tpu.dot_dimension_numbers<[1], [0], [0], [1], [0, 0, 1, 1], [], []>} : vector<128x128xbf16>, vector<128x128xbf16>, vector<128x128xf32> -> vector<128x128xf32>
    %c0_3 = arith.constant 0 : index
    %c0_4 = arith.constant 0 : index
    %3 = vector.load %arg3[%c0_3, %c0_4] : memref<1x128xf32, #tpu.memory_space<vmem>>, vector<1x128xf32>
    %4 = vector.broadcast %3 : vector<1x128xf32> to vector<128x128xf32>
    %5 = arith.addf %2, %4 : vector<128x128xf32>
    %cst_5 = arith.constant 0.000000e+00 : f32
    %6 = vector.broadcast %cst_5 : f32 to vector<128x128xf32>
    %7 = arith.maximumf %5, %6 : vector<128x128xf32>
    %8 = arith.truncf %7 : vector<128x128xf32> to vector<128x128xbf16>
    %c0_6 = arith.constant 0 : index
    %c0_7 = arith.constant 0 : index
    %9 = vector.load %arg4[%c0_6, %c0_7] : memref<128x128xbf16, #tpu.memory_space<vmem>>, vector<128x128xbf16>
    %cst_8 = arith.constant dense<0.000000e+00> : vector<128x128xf32>
    %10 = tpu.matmul %8, %9, %cst_8 {dimension_numbers = #tpu.dot_dimension_numbers<[1], [0], [0], [1], [0, 0, 1, 1], [], []>} : vector<128x128xbf16>, vector<128x128xbf16>, vector<128x128xf32> -> vector<128x128xf32>
    %11 = arith.truncf %10 : vector<128x128xf32> to vector<128x128xbf16>
    %c0_9 = arith.constant 0 : index
    %c0_10 = arith.constant 0 : index
    %12 = vector.load %arg5[%c0_9, %c0_10] : memref<128x128xbf16, #tpu.memory_space<vmem>>, vector<128x128xbf16>
    tpu.vector_store %arg5[%c0_9, %c0_10], %11 {strides = array<i32>} : memref<128x128xbf16, #tpu.memory_space<vmem>>, vector<128x128xbf16>,
    return
  }
  func.func @transform_0(%arg0: i32) -> (i32, i32) {
    %c0_i32 = arith.constant 0 : i32
    %c0_i32_0 = arith.constant 0 : i32
    return %arg0, %c0_i32 : i32, i32
  }
  func.func @transform_1(%arg0: i32) -> (i32, i32) {
    %c0_i32 = arith.constant 0 : i32
    %c0_i32_0 = arith.constant 0 : i32
    %c0_i32_1 = arith.constant 0 : i32
    return %c0_i32, %c0_i32_0 : i32, i32
  }
  func.func @transform_2(%arg0: i32) -> (i32, i32) {
    %c0_i32 = arith.constant 0 : i32
    %c0_i32_0 = arith.constant 0 : i32
    %c0_i32_1 = arith.constant 0 : i32
    return %c0_i32, %c0_i32_0 : i32, i32
  }
  func.func @transform_3(%arg0: i32) -> (i32, i32) {
    %c0_i32 = arith.constant 0 : i32
    %c0_i32_0 = arith.constant 0 : i32
    %c0_i32_1 = arith.constant 0 : i32
    return %c0_i32, %c0_i32_0 : i32, i32
  }
  func.func @transform_4(%arg0: i32) -> (i32, i32) {
    %c0_i32 = arith.constant 0 : i32
    %c0_i32_0 = arith.constant 0 : i32
    return %arg0, %c0_i32 : i32, i32
  }
}

module attributes {stable_mosaic.version = 11 : i64} {
  func.func @gcn_layer2_kernel(%arg0: i32, %arg1: memref<128x128xbf16, #tpu.memory_space<vmem>>, %arg2: memref<128x128xbf16, #tpu.memory_space<vmem>>, %arg3: memref<1x128xf32, #tpu.memory_space<vmem>>, %arg4: memref<128x128xbf16, #tpu.memory_space<vmem>>) attributes {dimension_semantics = [#tpu.dimension_semantics<parallel>], iteration_bounds = array<i64: 1>, scalar_prefetch = 0 : i64, scratch_operands = 0 : i64, tpu.core_type = #tpu.core_type<tc>, window_params = [{transform_indices = @transform_0, window_bounds = array<i64: 128, 128>}, {pipeline_mode = #tpu.pipeline_mode<synchronous>, transform_indices = @transform_1, window_bounds = array<i64: 128, 128>}, {pipeline_mode = #tpu.pipeline_mode<synchronous>, transform_indices = @transform_2, window_bounds = array<i64: 1, 128>}, {transform_indices = @transform_3, window_bounds = array<i64: 128, 128>}]} {
    %c0 = arith.constant 0 : index
    %c0_0 = arith.constant 0 : index
    %0 = vector.load %arg1[%c0, %c0_0] : memref<128x128xbf16, #tpu.memory_space<vmem>>, vector<128x128xbf16>
    %c0_1 = arith.constant 0 : index
    %c0_2 = arith.constant 0 : index
    %1 = vector.load %arg2[%c0_1, %c0_2] : memref<128x128xbf16, #tpu.memory_space<vmem>>, vector<128x128xbf16>
    %cst = arith.constant dense<0.000000e+00> : vector<128x128xf32>
    %2 = tpu.matmul %0, %1, %cst {dimension_numbers = #tpu.dot_dimension_numbers<[1], [0], [0], [1], [0, 0, 1, 1], [], []>} : vector<128x128xbf16>, vector<128x128xbf16>, vector<128x128xf32> -> vector<128x128xf32>
    %c0_3 = arith.constant 0 : index
    %c0_4 = arith.constant 0 : index
    %3 = vector.load %arg3[%c0_3, %c0_4] : memref<1x128xf32, #tpu.memory_space<vmem>>, vector<1x128xf32>
    %4 = vector.broadcast %3 : vector<1x128xf32> to vector<128x128xf32>
    %5 = arith.addf %2, %4 : vector<128x128xf32>
    %6 = arith.truncf %5 : vector<128x128xf32> to vector<128x128xbf16>
    %c0_5 = arith.constant 0 : index
    %c0_6 = arith.constant 0 : index
    %7 = vector.load %arg4[%c0_5, %c0_6] : memref<128x128xbf16, #tpu.memory_space<vmem>>, vector<128x128xbf16>
    tpu.vector_store %arg4[%c0_5, %c0_6], %6 {strides = array<i32>} : memref<128x128xbf16, #tpu.memory_space<vmem>>, vector<128x128xbf16>,
    return
  }
  func.func @transform_0(%arg0: i32) -> (i32, i32) {
    %c0_i32 = arith.constant 0 : i32
    %c0_i32_0 = arith.constant 0 : i32
    return %arg0, %c0_i32 : i32, i32
  }
  func.func @transform_1(%arg0: i32) -> (i32, i32) {
    %c0_i32 = arith.constant 0 : i32
    %c0_i32_0 = arith.constant 0 : i32
    %c0_i32_1 = arith.constant 0 : i32
    return %c0_i32, %c0_i32_0 : i32, i32
  }
  func.func @transform_2(%arg0: i32) -> (i32, i32) {
    %c0_i32 = arith.constant 0 : i32
    %c0_i32_0 = arith.constant 0 : i32
    %c0_i32_1 = arith.constant 0 : i32
    return %c0_i32, %c0_i32_0 : i32, i32
  }
  func.func @transform_3(%arg0: i32) -> (i32, i32) {
    %c0_i32 = arith.constant 0 : i32
    %c0_i32_0 = arith.constant 0 : i32
    return %arg0, %c0_i32 : i32, i32
  }
}

</mosaic_0001>

<llo_original>
// kernel: mul.1
$region0: #{mul.1}
  #allocation0 [shape = 's32[1]{0}', space=sflag, size = 0x4, scoped, tag = 'scoped memory for mul.1']
  %s0 = inlined_call_operand.vmem [shape: f32[48], index: 0, kind: input, shape index: {}]
  %s1 = inlined_call_operand.vmem [shape: f32[48], index: 1, kind: input, shape index: {}]
  %s2 = inlined_call_operand.vmem [shape: f32[48], index: 2, kind: output, shape index: {}]
  %v3 = vld [vmem:[%s0] sm:$0x1]
  %v4 = vld [vmem:[%s1] sm:$0x1]
  %5 = xla_tuple %v3, %v4
  %6 = xla_tuple %5
  %v7 = vmul.f32 %v3, %v4
  %8 = xla_tuple %v7
  %9 = vst [vmem:[%s2] sm:$0x1] %v7

// kernel: gcn_forward.3
$region0: #{gcn_forward.3}
  #allocation0 [shape = 'u32[]', space=smem, size = 0x4, offset = 0x4, fixed_abs, tag = 'smem constant byte address 0x4 - core index']
  #allocation1 [shape = 'u32[144,128]{1,0:T(1,128)}', space=vmem, size = 0x12000, scoped, tag = 'internal scratch']
  %s0 = inlined_call_operand.vmem [shape: bf16[128,128], index: 0, kind: input, shape index: {}]
  %s1 = inlined_call_operand.vmem [shape: bf16[128,128], index: 1, kind: input, shape index: {}]
  %s2 = inlined_call_operand.vmem [shape: bf16[128,128], index: 2, kind: output, shape index: {}]
  %s3 = sld [smem:[#allocation0]]
  $region18: #{gcn_forward.3} parent=0
    _
  %s5 = ssub.s32 1, %s3
  %s6 = scalar_select 0, %s5, %s3
  // Predicated region
  $region2: #{gcn_forward.3} parent=0 // pred_check
    _
  $region3: #{gcn_forward.3} parent=0 // pred_check_branch
    %8 = sbr.rel (0) target = $region5
  $region4: #{gcn_forward.3} parent=0 // pred_region
    _
  $region5: #{gcn_forward.3} parent=0 // pred_fallthru
    _
  // Predicated region
  $region6: #{gcn_forward.3} parent=0 // pred_check
    _
  $region7: #{gcn_forward.3} parent=0 // pred_check_branch
    %10 = sbr.rel (0) target = $region9
  $region8: #{gcn_forward.3} parent=0 // pred_region
    _
  $region9: #{gcn_forward.3} parent=0 // pred_fallthru
    _
  %v12 = vld [vmem:[%s0] sm:$0xf]
  %v13 = vld [vmem:[%s0 + $0x4] sm:$0xf]
  %v14 = vld [vmem:[%s0 + $0x8] sm:$0xf]
  %v15 = vld [vmem:[%s0 + $0xc] sm:$0xf]
  %v16 = vld [vmem:[%s0 + $0x10] sm:$0xf]
  %v17 = vld [vmem:[%s0 + $0x14] sm:$0xf]
  %v18 = vld [vmem:[%s0 + $0x18] sm:$0xf]
  %v19 = vld [vmem:[%s0 + $0x1c] sm:$0xf]
  %v20 = vld [vmem:[%s0 + $0x20] sm:$0xf]
  %v21 = vld [vmem:[%s0 + $0x24] sm:$0xf]
  %v22 = vld [vmem:[%s0 + $0x28] sm:$0xf]
  %v23 = vld [vmem:[%s0 + $0x2c] sm:$0xf]
  %v24 = vld [vmem:[%s0 + $0x30] sm:$0xf]
  %v25 = vld [vmem:[%s0 + $0x34] sm:$0xf]
  %v26 = vld [vmem:[%s0 + $0x38] sm:$0xf]
  %v27 = vld [vmem:[%s0 + $0x3c] sm:$0xf]
  %v28 = vld [vmem:[%s1] sm:$0xf]
  %v29 = vld [vmem:[%s1 + $0x4] sm:$0xf]
  %v30 = vld [vmem:[%s1 + $0x8] sm:$0xf]
  %v31 = vld [vmem:[%s1 + $0xc] sm:$0xf]
  %v32 = vld [vmem:[%s1 + $0x10] sm:$0xf]
  %v33 = vld [vmem:[%s1 + $0x14] sm:$0xf]
  %v34 = vld [vmem:[%s1 + $0x18] sm:$0xf]
  %v35 = vld [vmem:[%s1 + $0x1c] sm:$0xf]
  %v36 = vld [vmem:[%s1 + $0x20] sm:$0xf]
  %v37 = vld [vmem:[%s1 + $0x24] sm:$0xf]
  %v38 = vld [vmem:[%s1 + $0x28] sm:$0xf]
  %v39 = vld [vmem:[%s1 + $0x2c] sm:$0xf]
  %v40 = vld [vmem:[%s1 + $0x30] sm:$0xf]
  %v41 = vld [vmem:[%s1 + $0x34] sm:$0xf]
  %v42 = vld [vmem:[%s1 + $0x38] sm:$0xf]
  %v43 = vld [vmem:[%s1 + $0x3c] sm:$0xf]
  %v60 = vunpack.c.l.b16 %v12
  %v61 = vunpack.c.l.b16 %v13
  %v62 = vunpack.c.l.b16 %v14
  %v63 = vunpack.c.l.b16 %v15
  %v64 = vunpack.c.l.b16 %v16
  %v65 = vunpack.c.l.b16 %v17
  %v66 = vunpack.c.l.b16 %v18
  %v67 = vunpack.c.l.b16 %v19
  %v68 = vunpack.c.l.b16 %v20
  %v69 = vunpack.c.l.b16 %v21
  %v70 = vunpack.c.l.b16 %v22
  %v71 = vunpack.c.l.b16 %v23
  %v72 = vunpack.c.l.b16 %v24
  %v73 = vunpack.c.l.b16 %v25
  %v74 = vunpack.c.l.b16 %v26
  %v75 = vunpack.c.l.b16 %v27
  %v76 = vpack.c.b16 %v61, %v60
  %v77 = vpack.c.b16 %v63, %v62
  %v78 = vpack.c.b16 %v65, %v64
  %v79 = vpack.c.b16 %v67, %v66
  %v80 = vpack.c.b16 %v69, %v68
  %v81 = vpack.c.b16 %v71, %v70
  %v82 = vpack.c.b16 %v73, %v72
  %v83 = vpack.c.b16 %v75, %v74
  %v108 = vunpack.c.l.b16 %v28
  %v109 = vunpack.c.l.b16 %v29
  %v110 = vunpack.c.l.b16 %v30
  %v111 = vunpack.c.l.b16 %v31
  %v112 = vunpack.c.l.b16 %v32
  %v113 = vunpack.c.l.b16 %v33
  %v114 = vunpack.c.l.b16 %v34
  %v115 = vunpack.c.l.b16 %v35
  %v116 = vunpack.c.l.b16 %v36
  %v117 = vunpack.c.l.b16 %v37
  %v118 = vunpack.c.l.b16 %v38
  %v119 = vunpack.c.l.b16 %v39
  %v120 = vunpack.c.l.b16 %v40
  %v121 = vunpack.c.l.b16 %v41
  %v122 = vunpack.c.l.b16 %v42
  %v123 = vunpack.c.l.b16 %v43
  %v124 = vpack.c.b16 %v109, %v108
  %v125 = vpack.c.b16 %v111, %v110
  %v126 = vpack.c.b16 %v113, %v112
  %v127 = vpack.c.b16 %v115, %v114
  %v128 = vpack.c.b16 %v117, %v116
  %v129 = vpack.c.b16 %v119, %v118
  %v130 = vpack.c.b16 %v121, %v120
  %v131 = vpack.c.b16 %v123, %v122
  %140 = vmatprep.subr.bf16.mxu0 0
  %141 = vmatpush1.bf16.msra.mxu0 %v131
  %142 = vmatprep.subr.bf16.mxu0 0
  %143 = vmatpush1.bf16.msra.mxu0 %v130
  %144 = vmatprep.subr.bf16.mxu0 0
  %145 = vmatpush1.bf16.msra.mxu0 %v129
  %146 = vmatprep.subr.bf16.mxu0 0
  %147 = vmatpush1.bf16.msra.mxu0 %v128
  %148 = vmatprep.subr.bf16.mxu0 0
  %149 = vmatpush1.bf16.msra.mxu0 %v127
  %150 = vmatprep.subr.bf16.mxu0 0
  %151 = vmatpush1.bf16.msra.mxu0 %v126
  %152 = vmatprep.subr.bf16.mxu0 0
  %153 = vmatpush1.bf16.msra.mxu0 %v125
  %154 = vmatprep.subr.bf16.mxu0 0
  %155 = vmatpush1.bf16.msra.mxu0 %v124
  %156 = vmatprep.subr.bf16.mxu0 0
  %157 = vmatpush2.bf16.msra.mxu0 0
  %158 = vmatprep.subr.bf16.mxu0 0
  %159 = vmatpush2.bf16.msra.mxu0 0
  %160 = vmatprep.subr.bf16.mxu0 0
  %161 = vmatpush2.bf16.msra.mxu0 0
  %162 = vmatprep.subr.bf16.mxu0 0
  %163 = vmatpush2.bf16.msra.mxu0 0
  %164 = vmatprep.subr.bf16.mxu0 0
  %165 = vmatpush2.bf16.msra.mxu0 0
  %166 = vmatprep.subr.bf16.mxu0 0
  %167 = vmatpush2.bf16.msra.mxu0 0
  %168 = vmatprep.subr.bf16.mxu0 0
  %169 = vmatpush2.bf16.msra.mxu0 0
  %170 = vmatprep.subr.bf16.mxu0 0
  %171 = vmatpush2.bf16.msra.mxu0 0
  %172 = vmatprep.mubr.bf16.mxu0 0
  %173 = vmatmul.mubr.bf16.gmra.mxu0 %v76
  %v174 = vpop.f32.mrf.mxu0
  %v175 = vadd.f32 0.0, %v174
  %v176 = vpop.f32.mrf.mxu0
  %v177 = vpop.f32.mrf.mxu0
  %v178 = vadd.f32 0.0, %v177
  %v179 = vpop.f32.mrf.mxu0
  %180 = vmatprep.mubr.bf16.mxu0 0
  %181 = vmatmul.mubr.bf16.gmra.mxu0 %v77
  %v182 = vpop.f32.mrf.mxu0
  %v183 = vadd.f32 0.0, %v182
  %v184 = vpop.f32.mrf.mxu0
  %v185 = vpop.f32.mrf.mxu0
  %v186 = vadd.f32 0.0, %v185
  %v187 = vpop.f32.mrf.mxu0
  %188 = vmatprep.mubr.bf16.mxu0 0
  %189 = vmatmul.mubr.bf16.gmra.mxu0 %v78
  %v190 = vpop.f32.mrf.mxu0
  %v191 = vadd.f32 0.0, %v190
  %v192 = vpop.f32.mrf.mxu0
  %v193 = vpop.f32.mrf.mxu0
  %v194 = vadd.f32 0.0, %v193
  %v195 = vpop.f32.mrf.mxu0
  %196 = vmatprep.mubr.bf16.mxu0 0
  %197 = vmatmul.mubr.bf16.gmra.mxu0 %v79
  %v198 = vpop.f32.mrf.mxu0
  %v199 = vadd.f32 0.0, %v198
  %v200 = vpop.f32.mrf.mxu0
  %v201 = vpop.f32.mrf.mxu0
  %v202 = vadd.f32 0.0, %v201
  %v203 = vpop.f32.mrf.mxu0
  %204 = vmatprep.mubr.bf16.mxu0 0
  %205 = vmatmul.mubr.bf16.gmra.mxu0 %v80
  %v206 = vpop.f32.mrf.mxu0
  %v207 = vadd.f32 0.0, %v206
  %v208 = vpop.f32.mrf.mxu0
  %v209 = vpop.f32.mrf.mxu0
  %v210 = vadd.f32 0.0, %v209
  %v211 = vpop.f32.mrf.mxu0
  %212 = vmatprep.mubr.bf16.mxu0 0
  %213 = vmatmul.mubr.bf16.gmra.mxu0 %v81
  %v214 = vpop.f32.mrf.mxu0
  %v215 = vadd.f32 0.0, %v214
  %v216 = vpop.f32.mrf.mxu0
  %v217 = vpop.f32.mrf.mxu0
  %v218 = vadd.f32 0.0, %v217
  %v219 = vpop.f32.mrf.mxu0
  %220 = vmatprep.mubr.bf16.mxu0 0
  %221 = vmatmul.mubr.bf16.gmra.mxu0 %v82
  %v222 = vpop.f32.mrf.mxu0
  %v223 = vadd.f32 0.0, %v222
  %v224 = vpop.f32.mrf.mxu0
  %v225 = vpop.f32.mrf.mxu0
  %v226 = vadd.f32 0.0, %v225
  %v227 = vpop.f32.mrf.mxu0
  %228 = vmatprep.mubr.bf16.mxu0 0
  %229 = vmatmul.mubr.bf16.gmra.mxu0 %v83
  %v230 = vpop.f32.mrf.mxu0
  %v231 = vadd.f32 0.0, %v230
  %v232 = vpop.f32.mrf.mxu0
  %v233 = vpop.f32.mrf.mxu0
  %v234 = vadd.f32 0.0, %v233
  %v235 = vpop.f32.mrf.mxu0
  %236 = vdwg.mxu0
  %v237 = vpack.c.bf16 %v178, %v175
  %v238 = vpack.c.bf16 %v186, %v183
  %v239 = vpack.c.bf16 %v194, %v191
  %v240 = vpack.c.bf16 %v202, %v199
  %v241 = vpack.c.bf16 %v210, %v207
  %v242 = vpack.c.bf16 %v218, %v215
  %v243 = vpack.c.bf16 %v226, %v223
  %v244 = vpack.c.bf16 %v234, %v231
  %v253 = vunpack.c.l.b16 %v237
  %v254 = vunpack.c.h.b16 %v237
  %v255 = vunpack.c.l.b16 %v238
  %v256 = vunpack.c.h.b16 %v238
  %v257 = vunpack.c.l.b16 %v239
  %v258 = vunpack.c.h.b16 %v239
  %v259 = vunpack.c.l.b16 %v240
  %v260 = vunpack.c.h.b16 %v240
  %v261 = vunpack.c.l.b16 %v241
  %v262 = vunpack.c.h.b16 %v241
  %v263 = vunpack.c.l.b16 %v242
  %v264 = vunpack.c.h.b16 %v242
  %v265 = vunpack.c.l.b16 %v243
  %v266 = vunpack.c.h.b16 %v243
  %v267 = vunpack.c.l.b16 %v244
  %v268 = vunpack.c.h.b16 %v244
  %v269 = vpack.c.b16 %v253, %v253
  %v270 = vpack.c.b16 %v254, %v254
  %v271 = vpack.c.b16 %v255, %v255
  %v272 = vpack.c.b16 %v256, %v256
  %v273 = vpack.c.b16 %v257, %v257
  %v274 = vpack.c.b16 %v258, %v258
  %v275 = vpack.c.b16 %v259, %v259
  %v276 = vpack.c.b16 %v260, %v260
  %v277 = vpack.c.b16 %v261, %v261
  %v278 = vpack.c.b16 %v262, %v262
  %v279 = vpack.c.b16 %v263, %v263
  %v280 = vpack.c.b16 %v264, %v264
  %v281 = vpack.c.b16 %v265, %v265
  %v282 = vpack.c.b16 %v266, %v266
  %v283 = vpack.c.b16 %v267, %v267
  %v284 = vpack.c.b16 %v268, %v268
  %301 = vst [vmem:[%s2] sm:$0xf] %v269
  %302 = vst [vmem:[%s2 + $0x4] sm:$0xf] %v270
  %303 = vst [vmem:[%s2 + $0x8] sm:$0xf] %v271
  %304 = vst [vmem:[%s2 + $0xc] sm:$0xf] %v272
  %305 = vst [vmem:[%s2 + $0x10] sm:$0xf] %v273
  %306 = vst [vmem:[%s2 + $0x14] sm:$0xf] %v274
  %307 = vst [vmem:[%s2 + $0x18] sm:$0xf] %v275
  %308 = vst [vmem:[%s2 + $0x1c] sm:$0xf] %v276
  %309 = vst [vmem:[%s2 + $0x20] sm:$0xf] %v277
  %310 = vst [vmem:[%s2 + $0x24] sm:$0xf] %v278
  %311 = vst [vmem:[%s2 + $0x28] sm:$0xf] %v279
  %312 = vst [vmem:[%s2 + $0x2c] sm:$0xf] %v280
  %313 = vst [vmem:[%s2 + $0x30] sm:$0xf] %v281
  %314 = vst [vmem:[%s2 + $0x34] sm:$0xf] %v282
  %315 = vst [vmem:[%s2 + $0x38] sm:$0xf] %v283
  %316 = vst [vmem:[%s2 + $0x3c] sm:$0xf] %v284
  // Predicated region
  $region10: #{gcn_forward.3} parent=0 // pred_check
    _
  $region11: #{gcn_forward.3} parent=0 // pred_check_branch
    %318 = sbr.rel (0) target = $region13
  $region12: #{gcn_forward.3} parent=0 // pred_region
    _
  $region13: #{gcn_forward.3} parent=0 // pred_fallthru
    _
  // Predicated region
  $region14: #{gcn_forward.3} parent=0 // pred_check
    _
  $region15: #{gcn_forward.3} parent=0 // pred_check_branch
    %320 = sbr.rel (0) target = $region17
  $region16: #{gcn_forward.3} parent=0 // pred_region
    _
  $region17: #{gcn_forward.3} parent=0 // pred_fallthru
    _

// kernel: gcn_forward.4
$region0: #{gcn_forward.4}
  #allocation0 [shape = 'u32[]', space=smem, size = 0x4, offset = 0x4, fixed_abs, tag = 'smem constant byte address 0x4 - core index']
  #allocation1 [shape = 'u32[144,128]{1,0:T(1,128)}', space=vmem, size = 0x12000, scoped, tag = 'internal scratch']
  %s0 = inlined_call_operand.vmem [shape: bf16[128,128], index: 0, kind: input, shape index: {}]
  %s1 = inlined_call_operand.vmem [shape: bf16[128,128], index: 1, kind: input, shape index: {}]
  %s2 = inlined_call_operand.vmem [shape: f32[1,128], index: 2, kind: input, shape index: {}]
  %s3 = inlined_call_operand.vmem [shape: bf16[128,128], index: 3, kind: input, shape index: {}]
  %s4 = inlined_call_operand.vmem [shape: bf16[128,128], index: 4, kind: output, shape index: {}]
  %s5 = sld [smem:[#allocation0]]
  $region26: #{gcn_forward.4} parent=0
    _
  %s7 = ssub.s32 1, %s5
  %s8 = scalar_select 0, %s7, %s5
  // Predicated region
  $region2: #{gcn_forward.4} parent=0 // pred_check
    _
  $region3: #{gcn_forward.4} parent=0 // pred_check_branch
    %10 = sbr.rel (0) target = $region5
  $region4: #{gcn_forward.4} parent=0 // pred_region
    _
  $region5: #{gcn_forward.4} parent=0 // pred_fallthru
    _
  // Predicated region
  $region6: #{gcn_forward.4} parent=0 // pred_check
    _
  $region7: #{gcn_forward.4} parent=0 // pred_check_branch
    %12 = sbr.rel (0) target = $region9
  $region8: #{gcn_forward.4} parent=0 // pred_region
    _
  $region9: #{gcn_forward.4} parent=0 // pred_fallthru
    _
  // Predicated region
  $region10: #{gcn_forward.4} parent=0 // pred_check
    _
  $region11: #{gcn_forward.4} parent=0 // pred_check_branch
    %14 = sbr.rel (0) target = $region13
  $region12: #{gcn_forward.4} parent=0 // pred_region
    _
  $region13: #{gcn_forward.4} parent=0 // pred_fallthru
    _
  // Predicated region
  $region14: #{gcn_forward.4} parent=0 // pred_check
    _
  $region15: #{gcn_forward.4} parent=0 // pred_check_branch
    %16 = sbr.rel (0) target = $region17
  $region16: #{gcn_forward.4} parent=0 // pred_region
    _
  $region17: #{gcn_forward.4} parent=0 // pred_fallthru
    _
  %v18 = vld [vmem:[%s0] sm:$0xf]
  %v19 = vld [vmem:[%s0 + $0x4] sm:$0xf]
  %v20 = vld [vmem:[%s0 + $0x8] sm:$0xf]
  %v21 = vld [vmem:[%s0 + $0xc] sm:$0xf]
  %v22 = vld [vmem:[%s0 + $0x10] sm:$0xf]
  %v23 = vld [vmem:[%s0 + $0x14] sm:$0xf]
  %v24 = vld [vmem:[%s0 + $0x18] sm:$0xf]
  %v25 = vld [vmem:[%s0 + $0x1c] sm:$0xf]
  %v26 = vld [vmem:[%s0 + $0x20] sm:$0xf]
  %v27 = vld [vmem:[%s0 + $0x24] sm:$0xf]
  %v28 = vld [vmem:[%s0 + $0x28] sm:$0xf]
  %v29 = vld [vmem:[%s0 + $0x2c] sm:$0xf]
  %v30 = vld [vmem:[%s0 + $0x30] sm:$0xf]
  %v31 = vld [vmem:[%s0 + $0x34] sm:$0xf]
  %v32 = vld [vmem:[%s0 + $0x38] sm:$0xf]
  %v33 = vld [vmem:[%s0 + $0x3c] sm:$0xf]
  %v34 = vld [vmem:[%s1] sm:$0xf]
  %v35 = vld [vmem:[%s1 + $0x4] sm:$0xf]
  %v36 = vld [vmem:[%s1 + $0x8] sm:$0xf]
  %v37 = vld [vmem:[%s1 + $0xc] sm:$0xf]
  %v38 = vld [vmem:[%s1 + $0x10] sm:$0xf]
  %v39 = vld [vmem:[%s1 + $0x14] sm:$0xf]
  %v40 = vld [vmem:[%s1 + $0x18] sm:$0xf]
  %v41 = vld [vmem:[%s1 + $0x1c] sm:$0xf]
  %v42 = vld [vmem:[%s1 + $0x20] sm:$0xf]
  %v43 = vld [vmem:[%s1 + $0x24] sm:$0xf]
  %v44 = vld [vmem:[%s1 + $0x28] sm:$0xf]
  %v45 = vld [vmem:[%s1 + $0x2c] sm:$0xf]
  %v46 = vld [vmem:[%s1 + $0x30] sm:$0xf]
  %v47 = vld [vmem:[%s1 + $0x34] sm:$0xf]
  %v48 = vld [vmem:[%s1 + $0x38] sm:$0xf]
  %v49 = vld [vmem:[%s1 + $0x3c] sm:$0xf]
  %v50 = vld [vmem:[%s2] sm:$0x1]
  %v52 = vlaneseq
  %v53 = vshrl.u32 %v52, 7
  %v54 = vsub.s32 0, %v53
  %v55 = vrot.slane %v50, %v54
  %v73 = vunpack.c.l.b16 %v18
  %v74 = vunpack.c.l.b16 %v19
  %v75 = vunpack.c.l.b16 %v20
  %v76 = vunpack.c.l.b16 %v21
  %v77 = vunpack.c.l.b16 %v22
  %v78 = vunpack.c.l.b16 %v23
  %v79 = vunpack.c.l.b16 %v24
  %v80 = vunpack.c.l.b16 %v25
  %v81 = vunpack.c.l.b16 %v26
  %v82 = vunpack.c.l.b16 %v27
  %v83 = vunpack.c.l.b16 %v28
  %v84 = vunpack.c.l.b16 %v29
  %v85 = vunpack.c.l.b16 %v30
  %v86 = vunpack.c.l.b16 %v31
  %v87 = vunpack.c.l.b16 %v32
  %v88 = vunpack.c.l.b16 %v33
  %v89 = vpack.c.b16 %v74, %v73
  %v90 = vpack.c.b16 %v76, %v75
  %v91 = vpack.c.b16 %v78, %v77
  %v92 = vpack.c.b16 %v80, %v79
  %v93 = vpack.c.b16 %v82, %v81
  %v94 = vpack.c.b16 %v84, %v83
  %v95 = vpack.c.b16 %v86, %v85
  %v96 = vpack.c.b16 %v88, %v87
  %v121 = vunpack.c.l.b16 %v34
  %v122 = vunpack.c.l.b16 %v35
  %v123 = vunpack.c.l.b16 %v36
  %v124 = vunpack.c.l.b16 %v37
  %v125 = vunpack.c.l.b16 %v38
  %v126 = vunpack.c.l.b16 %v39
  %v127 = vunpack.c.l.b16 %v40
  %v128 = vunpack.c.l.b16 %v41
  %v129 = vunpack.c.l.b16 %v42
  %v130 = vunpack.c.l.b16 %v43
  %v131 = vunpack.c.l.b16 %v44
  %v132 = vunpack.c.l.b16 %v45
  %v133 = vunpack.c.l.b16 %v46
  %v134 = vunpack.c.l.b16 %v47
  %v135 = vunpack.c.l.b16 %v48
  %v136 = vunpack.c.l.b16 %v49
  %v137 = vpack.c.b16 %v122, %v121
  %v138 = vpack.c.b16 %v124, %v123
  %v139 = vpack.c.b16 %v126, %v125
  %v140 = vpack.c.b16 %v128, %v127
  %v141 = vpack.c.b16 %v130, %v129
  %v142 = vpack.c.b16 %v132, %v131
  %v143 = vpack.c.b16 %v134, %v133
  %v144 = vpack.c.b16 %v136, %v135
  %153 = vmatprep.subr.bf16.mxu0 0
  %154 = vmatpush1.bf16.msra.mxu0 %v144
  %155 = vmatprep.subr.bf16.mxu0 0
  %156 = vmatpush1.bf16.msra.mxu0 %v143
  %157 = vmatprep.subr.bf16.mxu0 0
  %158 = vmatpush1.bf16.msra.mxu0 %v142
  %159 = vmatprep.subr.bf16.mxu0 0
  %160 = vmatpush1.bf16.msra.mxu0 %v141
  %161 = vmatprep.subr.bf16.mxu0 0
  %162 = vmatpush1.bf16.msra.mxu0 %v140
  %163 = vmatprep.subr.bf16.mxu0 0
  %164 = vmatpush1.bf16.msra.mxu0 %v139
  %165 = vmatprep.subr.bf16.mxu0 0
  %166 = vmatpush1.bf16.msra.mxu0 %v138
  %167 = vmatprep.subr.bf16.mxu0 0
  %168 = vmatpush1.bf16.msra.mxu0 %v137
  %169 = vmatprep.subr.bf16.mxu0 0
  %170 = vmatpush2.bf16.msra.mxu0 0
  %171 = vmatprep.subr.bf16.mxu0 0
  %172 = vmatpush2.bf16.msra.mxu0 0
  %173 = vmatprep.subr.bf16.mxu0 0
  %174 = vmatpush2.bf16.msra.mxu0 0
  %175 = vmatprep.subr.bf16.mxu0 0
  %176 = vmatpush2.bf16.msra.mxu0 0
  %177 = vmatprep.subr.bf16.mxu0 0
  %178 = vmatpush2.bf16.msra.mxu0 0
  %179 = vmatprep.subr.bf16.mxu0 0
  %180 = vmatpush2.bf16.msra.mxu0 0
  %181 = vmatprep.subr.bf16.mxu0 0
  %182 = vmatpush2.bf16.msra.mxu0 0
  %183 = vmatprep.subr.bf16.mxu0 0
  %184 = vmatpush2.bf16.msra.mxu0 0
  %185 = vmatprep.mubr.bf16.mxu0 0
  %186 = vmatmul.mubr.bf16.gmra.mxu0 %v89
  %v187 = vpop.f32.mrf.mxu0
  %v188 = vadd.f32 %v55, %v187
  %v189 = vpop.f32.mrf.mxu0
  %v190 = vpop.f32.mrf.mxu0
  %v191 = vadd.f32 %v55, %v190
  %v192 = vpop.f32.mrf.mxu0
  %193 = vmatprep.mubr.bf16.mxu0 0
  %194 = vmatmul.mubr.bf16.gmra.mxu0 %v90
  %v195 = vpop.f32.mrf.mxu0
  %v196 = vadd.f32 %v55, %v195
  %v197 = vpop.f32.mrf.mxu0
  %v198 = vpop.f32.mrf.mxu0
  %v199 = vadd.f32 %v55, %v198
  %v200 = vpop.f32.mrf.mxu0
  %201 = vmatprep.mubr.bf16.mxu0 0
  %202 = vmatmul.mubr.bf16.gmra.mxu0 %v91
  %v203 = vpop.f32.mrf.mxu0
  %v204 = vadd.f32 %v55, %v203
  %v205 = vpop.f32.mrf.mxu0
  %v206 = vpop.f32.mrf.mxu0
  %v207 = vadd.f32 %v55, %v206
  %v208 = vpop.f32.mrf.mxu0
  %209 = vmatprep.mubr.bf16.mxu0 0
  %210 = vmatmul.mubr.bf16.gmra.mxu0 %v92
  %v211 = vpop.f32.mrf.mxu0
  %v212 = vadd.f32 %v55, %v211
  %v213 = vpop.f32.mrf.mxu0
  %v214 = vpop.f32.mrf.mxu0
  %v215 = vadd.f32 %v55, %v214
  %v216 = vpop.f32.mrf.mxu0
  %217 = vmatprep.mubr.bf16.mxu0 0
  %218 = vmatmul.mubr.bf16.gmra.mxu0 %v93
  %v219 = vpop.f32.mrf.mxu0
  %v220 = vadd.f32 %v55, %v219
  %v221 = vpop.f32.mrf.mxu0
  %v222 = vpop.f32.mrf.mxu0
  %v223 = vadd.f32 %v55, %v222
  %v224 = vpop.f32.mrf.mxu0
  %225 = vmatprep.mubr.bf16.mxu0 0
  %226 = vmatmul.mubr.bf16.gmra.mxu0 %v94
  %v227 = vpop.f32.mrf.mxu0
  %v228 = vadd.f32 %v55, %v227
  %v229 = vpop.f32.mrf.mxu0
  %v230 = vpop.f32.mrf.mxu0
  %v231 = vadd.f32 %v55, %v230
  %v232 = vpop.f32.mrf.mxu0
  %233 = vmatprep.mubr.bf16.mxu0 0
  %234 = vmatmul.mubr.bf16.gmra.mxu0 %v95
  %v235 = vpop.f32.mrf.mxu0
  %v236 = vadd.f32 %v55, %v235
  %v237 = vpop.f32.mrf.mxu0
  %v238 = vpop.f32.mrf.mxu0
  %v239 = vadd.f32 %v55, %v238
  %v240 = vpop.f32.mrf.mxu0
  %241 = vmatprep.mubr.bf16.mxu0 0
  %242 = vmatmul.mubr.bf16.gmra.mxu0 %v96
  %v243 = vpop.f32.mrf.mxu0
  %v244 = vadd.f32 %v55, %v243
  %v245 = vpop.f32.mrf.mxu0
  %v246 = vpop.f32.mrf.mxu0
  %v247 = vadd.f32 %v55, %v246
  %v248 = vpop.f32.mrf.mxu0
  %249 = vdwg.mxu0
  %v250 = vmax.f32 %v188, 0.0
  %v251 = vmax.f32 %v191, 0.0
  %v252 = vmax.f32 %v196, 0.0
  %v253 = vmax.f32 %v199, 0.0
  %v254 = vmax.f32 %v204, 0.0
  %v255 = vmax.f32 %v207, 0.0
  %v256 = vmax.f32 %v212, 0.0
  %v257 = vmax.f32 %v215, 0.0
  %v258 = vmax.f32 %v220, 0.0
  %v259 = vmax.f32 %v223, 0.0
  %v260 = vmax.f32 %v228, 0.0
  %v261 = vmax.f32 %v231, 0.0
  %v262 = vmax.f32 %v236, 0.0
  %v263 = vmax.f32 %v239, 0.0
  %v264 = vmax.f32 %v244, 0.0
  %v265 = vmax.f32 %v247, 0.0
  %v266 = vpack.c.bf16 %v251, %v250
  %v267 = vpack.c.bf16 %v253, %v252
  %v268 = vpack.c.bf16 %v255, %v254
  %v269 = vpack.c.bf16 %v257, %v256
  %v270 = vpack.c.bf16 %v259, %v258
  %v271 = vpack.c.bf16 %v261, %v260
  %v272 = vpack.c.bf16 %v263, %v262
  %v273 = vpack.c.bf16 %v265, %v264
  %v274 = vld [vmem:[%s3] sm:$0xf]
  %v275 = vld [vmem:[%s3 + $0x4] sm:$0xf]
  %v276 = vld [vmem:[%s3 + $0x8] sm:$0xf]
  %v277 = vld [vmem:[%s3 + $0xc] sm:$0xf]
  %v278 = vld [vmem:[%s3 + $0x10] sm:$0xf]
  %v279 = vld [vmem:[%s3 + $0x14] sm:$0xf]
  %v280 = vld [vmem:[%s3 + $0x18] sm:$0xf]
  %v281 = vld [vmem:[%s3 + $0x1c] sm:$0xf]
  %v282 = vld [vmem:[%s3 + $0x20] sm:$0xf]
  %v283 = vld [vmem:[%s3 + $0x24] sm:$0xf]
  %v284 = vld [vmem:[%s3 + $0x28] sm:$0xf]
  %v285 = vld [vmem:[%s3 + $0x2c] sm:$0xf]
  %v286 = vld [vmem:[%s3 + $0x30] sm:$0xf]
  %v287 = vld [vmem:[%s3 + $0x34] sm:$0xf]
  %v288 = vld [vmem:[%s3 + $0x38] sm:$0xf]
  %v289 = vld [vmem:[%s3 + $0x3c] sm:$0xf]
  %v306 = vunpack.c.l.b16 %v274
  %v307 = vunpack.c.l.b16 %v275
  %v308 = vunpack.c.l.b16 %v276
  %v309 = vunpack.c.l.b16 %v277
  %v310 = vunpack.c.l.b16 %v278
  %v311 = vunpack.c.l.b16 %v279
  %v312 = vunpack.c.l.b16 %v280
  %v313 = vunpack.c.l.b16 %v281
  %v314 = vunpack.c.l.b16 %v282
  %v315 = vunpack.c.l.b16 %v283
  %v316 = vunpack.c.l.b16 %v284
  %v317 = vunpack.c.l.b16 %v285
  %v318 = vunpack.c.l.b16 %v286
  %v319 = vunpack.c.l.b16 %v287
  %v320 = vunpack.c.l.b16 %v288
  %v321 = vunpack.c.l.b16 %v289
  %v322 = vpack.c.b16 %v307, %v306
  %v323 = vpack.c.b16 %v309, %v308
  %v324 = vpack.c.b16 %v311, %v310
  %v325 = vpack.c.b16 %v313, %v312
  %v326 = vpack.c.b16 %v315, %v314
  %v327 = vpack.c.b16 %v317, %v316
  %v328 = vpack.c.b16 %v319, %v318
  %v329 = vpack.c.b16 %v321, %v320
  %338 = vmatprep.subr.bf16.mxu0 0
  %339 = vmatpush1.bf16.msra.mxu0 %v329
  %340 = vmatprep.subr.bf16.mxu0 0
  %341 = vmatpush1.bf16.msra.mxu0 %v328
  %342 = vmatprep.subr.bf16.mxu0 0
  %343 = vmatpush1.bf16.msra.mxu0 %v327
  %344 = vmatprep.subr.bf16.mxu0 0
  %345 = vmatpush1.bf16.msra.mxu0 %v326
  %346 = vmatprep.subr.bf16.mxu0 0
  %347 = vmatpush1.bf16.msra.mxu0 %v325
  %348 = vmatprep.subr.bf16.mxu0 0
  %349 = vmatpush1.bf16.msra.mxu0 %v324
  %350 = vmatprep.subr.bf16.mxu0 0
  %351 = vmatpush1.bf16.msra.mxu0 %v323
  %352 = vmatprep.subr.bf16.mxu0 0
  %353 = vmatpush1.bf16.msra.mxu0 %v322
  %354 = vmatprep.subr.bf16.mxu0 0
  %355 = vmatpush2.bf16.msra.mxu0 0
  %356 = vmatprep.subr.bf16.mxu0 0
  %357 = vmatpush2.bf16.msra.mxu0 0
  %358 = vmatprep.subr.bf16.mxu0 0
  %359 = vmatpush2.bf16.msra.mxu0 0
  %360 = vmatprep.subr.bf16.mxu0 0
  %361 = vmatpush2.bf16.msra.mxu0 0
  %362 = vmatprep.subr.bf16.mxu0 0
  %363 = vmatpush2.bf16.msra.mxu0 0
  %364 = vmatprep.subr.bf16.mxu0 0
  %365 = vmatpush2.bf16.msra.mxu0 0
  %366 = vmatprep.subr.bf16.mxu0 0
  %367 = vmatpush2.bf16.msra.mxu0 0
  %368 = vmatprep.subr.bf16.mxu0 0
  %369 = vmatpush2.bf16.msra.mxu0 0
  %370 = vmatprep.mubr.bf16.mxu0 0
  %371 = vmatmul.mubr.bf16.gmra.mxu0 %v266
  %v372 = vpop.f32.mrf.mxu0
  %v373 = vadd.f32 0.0, %v372
  %v374 = vpop.f32.mrf.mxu0
  %v375 = vpop.f32.mrf.mxu0
  %v376 = vadd.f32 0.0, %v375
  %v377 = vpop.f32.mrf.mxu0
  %378 = vmatprep.mubr.bf16.mxu0 0
  %379 = vmatmul.mubr.bf16.gmra.mxu0 %v267
  %v380 = vpop.f32.mrf.mxu0
  %v381 = vadd.f32 0.0, %v380
  %v382 = vpop.f32.mrf.mxu0
  %v383 = vpop.f32.mrf.mxu0
  %v384 = vadd.f32 0.0, %v383
  %v385 = vpop.f32.mrf.mxu0
  %386 = vmatprep.mubr.bf16.mxu0 0
  %387 = vmatmul.mubr.bf16.gmra.mxu0 %v268
  %v388 = vpop.f32.mrf.mxu0
  %v389 = vadd.f32 0.0, %v388
  %v390 = vpop.f32.mrf.mxu0
  %v391 = vpop.f32.mrf.mxu0
  %v392 = vadd.f32 0.0, %v391
  %v393 = vpop.f32.mrf.mxu0
  %394 = vmatprep.mubr.bf16.mxu0 0
  %395 = vmatmul.mubr.bf16.gmra.mxu0 %v269
  %v396 = vpop.f32.mrf.mxu0
  %v397 = vadd.f32 0.0, %v396
  %v398 = vpop.f32.mrf.mxu0
  %v399 = vpop.f32.mrf.mxu0
  %v400 = vadd.f32 0.0, %v399
  %v401 = vpop.f32.mrf.mxu0
  %402 = vmatprep.mubr.bf16.mxu0 0
  %403 = vmatmul.mubr.bf16.gmra.mxu0 %v270
  %v404 = vpop.f32.mrf.mxu0
  %v405 = vadd.f32 0.0, %v404
  %v406 = vpop.f32.mrf.mxu0
  %v407 = vpop.f32.mrf.mxu0
  %v408 = vadd.f32 0.0, %v407
  %v409 = vpop.f32.mrf.mxu0
  %410 = vmatprep.mubr.bf16.mxu0 0
  %411 = vmatmul.mubr.bf16.gmra.mxu0 %v271
  %v412 = vpop.f32.mrf.mxu0
  %v413 = vadd.f32 0.0, %v412
  %v414 = vpop.f32.mrf.mxu0
  %v415 = vpop.f32.mrf.mxu0
  %v416 = vadd.f32 0.0, %v415
  %v417 = vpop.f32.mrf.mxu0
  %418 = vmatprep.mubr.bf16.mxu0 0
  %419 = vmatmul.mubr.bf16.gmra.mxu0 %v272
  %v420 = vpop.f32.mrf.mxu0
  %v421 = vadd.f32 0.0, %v420
  %v422 = vpop.f32.mrf.mxu0
  %v423 = vpop.f32.mrf.mxu0
  %v424 = vadd.f32 0.0, %v423
  %v425 = vpop.f32.mrf.mxu0
  %426 = vmatprep.mubr.bf16.mxu0 0
  %427 = vmatmul.mubr.bf16.gmra.mxu0 %v273
  %v428 = vpop.f32.mrf.mxu0
  %v429 = vadd.f32 0.0, %v428
  %v430 = vpop.f32.mrf.mxu0
  %v431 = vpop.f32.mrf.mxu0
  %v432 = vadd.f32 0.0, %v431
  %v433 = vpop.f32.mrf.mxu0
  %434 = vdwg.mxu0
  %v435 = vpack.c.bf16 %v376, %v373
  %v436 = vpack.c.bf16 %v384, %v381
  %v437 = vpack.c.bf16 %v392, %v389
  %v438 = vpack.c.bf16 %v400, %v397
  %v439 = vpack.c.bf16 %v408, %v405
  %v440 = vpack.c.bf16 %v416, %v413
  %v441 = vpack.c.bf16 %v424, %v421
  %v442 = vpack.c.bf16 %v432, %v429
  %v451 = vunpack.c.l.b16 %v435
  %v452 = vunpack.c.h.b16 %v435
  %v453 = vunpack.c.l.b16 %v436
  %v454 = vunpack.c.h.b16 %v436
  %v455 = vunpack.c.l.b16 %v437
  %v456 = vunpack.c.h.b16 %v437
  %v457 = vunpack.c.l.b16 %v438
  %v458 = vunpack.c.h.b16 %v438
  %v459 = vunpack.c.l.b16 %v439
  %v460 = vunpack.c.h.b16 %v439
  %v461 = vunpack.c.l.b16 %v440
  %v462 = vunpack.c.h.b16 %v440
  %v463 = vunpack.c.l.b16 %v441
  %v464 = vunpack.c.h.b16 %v441
  %v465 = vunpack.c.l.b16 %v442
  %v466 = vunpack.c.h.b16 %v442
  %v467 = vpack.c.b16 %v451, %v451
  %v468 = vpack.c.b16 %v452, %v452
  %v469 = vpack.c.b16 %v453, %v453
  %v470 = vpack.c.b16 %v454, %v454
  %v471 = vpack.c.b16 %v455, %v455
  %v472 = vpack.c.b16 %v456, %v456
  %v473 = vpack.c.b16 %v457, %v457
  %v474 = vpack.c.b16 %v458, %v458
  %v475 = vpack.c.b16 %v459, %v459
  %v476 = vpack.c.b16 %v460, %v460
  %v477 = vpack.c.b16 %v461, %v461
  %v478 = vpack.c.b16 %v462, %v462
  %v479 = vpack.c.b16 %v463, %v463
  %v480 = vpack.c.b16 %v464, %v464
  %v481 = vpack.c.b16 %v465, %v465
  %v482 = vpack.c.b16 %v466, %v466
  %499 = vst [vmem:[%s4] sm:$0xf] %v467
  %500 = vst [vmem:[%s4 + $0x4] sm:$0xf] %v468
  %501 = vst [vmem:[%s4 + $0x8] sm:$0xf] %v469
  %502 = vst [vmem:[%s4 + $0xc] sm:$0xf] %v470
  %503 = vst [vmem:[%s4 + $0x10] sm:$0xf] %v471
  %504 = vst [vmem:[%s4 + $0x14] sm:$0xf] %v472
  %505 = vst [vmem:[%s4 + $0x18] sm:$0xf] %v473
  %506 = vst [vmem:[%s4 + $0x1c] sm:$0xf] %v474
  %507 = vst [vmem:[%s4 + $0x20] sm:$0xf] %v475
  %508 = vst [vmem:[%s4 + $0x24] sm:$0xf] %v476
  %509 = vst [vmem:[%s4 + $0x28] sm:$0xf] %v477
  %510 = vst [vmem:[%s4 + $0x2c] sm:$0xf] %v478
  %511 = vst [vmem:[%s4 + $0x30] sm:$0xf] %v479
  %512 = vst [vmem:[%s4 + $0x34] sm:$0xf] %v480
  %513 = vst [vmem:[%s4 + $0x38] sm:$0xf] %v481
  %514 = vst [vmem:[%s4 + $0x3c] sm:$0xf] %v482
  // Predicated region
  $region18: #{gcn_forward.4} parent=0 // pred_check
    _
  $region19: #{gcn_forward.4} parent=0 // pred_check_branch
    %516 = sbr.rel (0) target = $region21
  $region20: #{gcn_forward.4} parent=0 // pred_region
    _
  $region21: #{gcn_forward.4} parent=0 // pred_fallthru
    _
  // Predicated region
  $region22: #{gcn_forward.4} parent=0 // pred_check
    _
  $region23: #{gcn_forward.4} parent=0 // pred_check_branch
    %518 = sbr.rel (0) target = $region25
  $region24: #{gcn_forward.4} parent=0 // pred_region
    _
  $region25: #{gcn_forward.4} parent=0 // pred_fallthru
    _

// kernel: gcn_forward.5
$region0: #{gcn_forward.5}
  #allocation0 [shape = 'u32[]', space=smem, size = 0x4, offset = 0x4, fixed_abs, tag = 'smem constant byte address 0x4 - core index']
  #allocation1 [shape = 'u32[144,128]{1,0:T(1,128)}', space=vmem, size = 0x12000, scoped, tag = 'internal scratch']
  %s0 = inlined_call_operand.vmem [shape: bf16[128,128], index: 0, kind: input, shape index: {}]
  %s1 = inlined_call_operand.vmem [shape: bf16[128,128], index: 1, kind: input, shape index: {}]
  %s2 = inlined_call_operand.vmem [shape: f32[1,128], index: 2, kind: input, shape index: {}]
  %s3 = inlined_call_operand.vmem [shape: bf16[128,128], index: 3, kind: output, shape index: {}]
  %s4 = sld [smem:[#allocation0]]
  $region22: #{gcn_forward.5} parent=0
    _
  %s6 = ssub.s32 1, %s4
  %s7 = scalar_select 0, %s6, %s4
  // Predicated region
  $region2: #{gcn_forward.5} parent=0 // pred_check
    _
  $region3: #{gcn_forward.5} parent=0 // pred_check_branch
    %9 = sbr.rel (0) target = $region5
  $region4: #{gcn_forward.5} parent=0 // pred_region
    _
  $region5: #{gcn_forward.5} parent=0 // pred_fallthru
    _
  // Predicated region
  $region6: #{gcn_forward.5} parent=0 // pred_check
    _
  $region7: #{gcn_forward.5} parent=0 // pred_check_branch
    %11 = sbr.rel (0) target = $region9
  $region8: #{gcn_forward.5} parent=0 // pred_region
    _
  $region9: #{gcn_forward.5} parent=0 // pred_fallthru
    _
  // Predicated region
  $region10: #{gcn_forward.5} parent=0 // pred_check
    _
  $region11: #{gcn_forward.5} parent=0 // pred_check_branch
    %13 = sbr.rel (0) target = $region13
  $region12: #{gcn_forward.5} parent=0 // pred_region
    _
  $region13: #{gcn_forward.5} parent=0 // pred_fallthru
    _
  %v15 = vld [vmem:[%s0] sm:$0xf]
  %v16 = vld [vmem:[%s0 + $0x4] sm:$0xf]
  %v17 = vld [vmem:[%s0 + $0x8] sm:$0xf]
  %v18 = vld [vmem:[%s0 + $0xc] sm:$0xf]
  %v19 = vld [vmem:[%s0 + $0x10] sm:$0xf]
  %v20 = vld [vmem:[%s0 + $0x14] sm:$0xf]
  %v21 = vld [vmem:[%s0 + $0x18] sm:$0xf]
  %v22 = vld [vmem:[%s0 + $0x1c] sm:$0xf]
  %v23 = vld [vmem:[%s0 + $0x20] sm:$0xf]
  %v24 = vld [vmem:[%s0 + $0x24] sm:$0xf]
  %v25 = vld [vmem:[%s0 + $0x28] sm:$0xf]
  %v26 = vld [vmem:[%s0 + $0x2c] sm:$0xf]
  %v27 = vld [vmem:[%s0 + $0x30] sm:$0xf]
  %v28 = vld [vmem:[%s0 + $0x34] sm:$0xf]
  %v29 = vld [vmem:[%s0 + $0x38] sm:$0xf]
  %v30 = vld [vmem:[%s0 + $0x3c] sm:$0xf]
  %v31 = vld [vmem:[%s1] sm:$0xf]
  %v32 = vld [vmem:[%s1 + $0x4] sm:$0xf]
  %v33 = vld [vmem:[%s1 + $0x8] sm:$0xf]
  %v34 = vld [vmem:[%s1 + $0xc] sm:$0xf]
  %v35 = vld [vmem:[%s1 + $0x10] sm:$0xf]
  %v36 = vld [vmem:[%s1 + $0x14] sm:$0xf]
  %v37 = vld [vmem:[%s1 + $0x18] sm:$0xf]
  %v38 = vld [vmem:[%s1 + $0x1c] sm:$0xf]
  %v39 = vld [vmem:[%s1 + $0x20] sm:$0xf]
  %v40 = vld [vmem:[%s1 + $0x24] sm:$0xf]
  %v41 = vld [vmem:[%s1 + $0x28] sm:$0xf]
  %v42 = vld [vmem:[%s1 + $0x2c] sm:$0xf]
  %v43 = vld [vmem:[%s1 + $0x30] sm:$0xf]
  %v44 = vld [vmem:[%s1 + $0x34] sm:$0xf]
  %v45 = vld [vmem:[%s1 + $0x38] sm:$0xf]
  %v46 = vld [vmem:[%s1 + $0x3c] sm:$0xf]
  %v47 = vld [vmem:[%s2] sm:$0x1]
  %v49 = vlaneseq
  %v50 = vshrl.u32 %v49, 7
  %v51 = vsub.s32 0, %v50
  %v52 = vrot.slane %v47, %v51
  %v70 = vunpack.c.l.b16 %v15
  %v71 = vunpack.c.l.b16 %v16
  %v72 = vunpack.c.l.b16 %v17
  %v73 = vunpack.c.l.b16 %v18
  %v74 = vunpack.c.l.b16 %v19
  %v75 = vunpack.c.l.b16 %v20
  %v76 = vunpack.c.l.b16 %v21
  %v77 = vunpack.c.l.b16 %v22
  %v78 = vunpack.c.l.b16 %v23
  %v79 = vunpack.c.l.b16 %v24
  %v80 = vunpack.c.l.b16 %v25
  %v81 = vunpack.c.l.b16 %v26
  %v82 = vunpack.c.l.b16 %v27
  %v83 = vunpack.c.l.b16 %v28
  %v84 = vunpack.c.l.b16 %v29
  %v85 = vunpack.c.l.b16 %v30
  %v86 = vpack.c.b16 %v71, %v70
  %v87 = vpack.c.b16 %v73, %v72
  %v88 = vpack.c.b16 %v75, %v74
  %v89 = vpack.c.b16 %v77, %v76
  %v90 = vpack.c.b16 %v79, %v78
  %v91 = vpack.c.b16 %v81, %v80
  %v92 = vpack.c.b16 %v83, %v82
  %v93 = vpack.c.b16 %v85, %v84
  %v118 = vunpack.c.l.b16 %v31
  %v119 = vunpack.c.l.b16 %v32
  %v120 = vunpack.c.l.b16 %v33
  %v121 = vunpack.c.l.b16 %v34
  %v122 = vunpack.c.l.b16 %v35
  %v123 = vunpack.c.l.b16 %v36
  %v124 = vunpack.c.l.b16 %v37
  %v125 = vunpack.c.l.b16 %v38
  %v126 = vunpack.c.l.b16 %v39
  %v127 = vunpack.c.l.b16 %v40
  %v128 = vunpack.c.l.b16 %v41
  %v129 = vunpack.c.l.b16 %v42
  %v130 = vunpack.c.l.b16 %v43
  %v131 = vunpack.c.l.b16 %v44
  %v132 = vunpack.c.l.b16 %v45
  %v133 = vunpack.c.l.b16 %v46
  %v134 = vpack.c.b16 %v119, %v118
  %v135 = vpack.c.b16 %v121, %v120
  %v136 = vpack.c.b16 %v123, %v122
  %v137 = vpack.c.b16 %v125, %v124
  %v138 = vpack.c.b16 %v127, %v126
  %v139 = vpack.c.b16 %v129, %v128
  %v140 = vpack.c.b16 %v131, %v130
  %v141 = vpack.c.b16 %v133, %v132
  %150 = vmatprep.subr.bf16.mxu0 0
  %151 = vmatpush1.bf16.msra.mxu0 %v141
  %152 = vmatprep.subr.bf16.mxu0 0
  %153 = vmatpush1.bf16.msra.mxu0 %v140
  %154 = vmatprep.subr.bf16.mxu0 0
  %155 = vmatpush1.bf16.msra.mxu0 %v139
  %156 = vmatprep.subr.bf16.mxu0 0
  %157 = vmatpush1.bf16.msra.mxu0 %v138
  %158 = vmatprep.subr.bf16.mxu0 0
  %159 = vmatpush1.bf16.msra.mxu0 %v137
  %160 = vmatprep.subr.bf16.mxu0 0
  %161 = vmatpush1.bf16.msra.mxu0 %v136
  %162 = vmatprep.subr.bf16.mxu0 0
  %163 = vmatpush1.bf16.msra.mxu0 %v135
  %164 = vmatprep.subr.bf16.mxu0 0
  %165 = vmatpush1.bf16.msra.mxu0 %v134
  %166 = vmatprep.subr.bf16.mxu0 0
  %167 = vmatpush2.bf16.msra.mxu0 0
  %168 = vmatprep.subr.bf16.mxu0 0
  %169 = vmatpush2.bf16.msra.mxu0 0
  %170 = vmatprep.subr.bf16.mxu0 0
  %171 = vmatpush2.bf16.msra.mxu0 0
  %172 = vmatprep.subr.bf16.mxu0 0
  %173 = vmatpush2.bf16.msra.mxu0 0
  %174 = vmatprep.subr.bf16.mxu0 0
  %175 = vmatpush2.bf16.msra.mxu0 0
  %176 = vmatprep.subr.bf16.mxu0 0
  %177 = vmatpush2.bf16.msra.mxu0 0
  %178 = vmatprep.subr.bf16.mxu0 0
  %179 = vmatpush2.bf16.msra.mxu0 0
  %180 = vmatprep.subr.bf16.mxu0 0
  %181 = vmatpush2.bf16.msra.mxu0 0
  %182 = vmatprep.mubr.bf16.mxu0 0
  %183 = vmatmul.mubr.bf16.gmra.mxu0 %v86
  %v184 = vpop.f32.mrf.mxu0
  %v185 = vadd.f32 %v52, %v184
  %v186 = vpop.f32.mrf.mxu0
  %v187 = vpop.f32.mrf.mxu0
  %v188 = vadd.f32 %v52, %v187
  %v189 = vpop.f32.mrf.mxu0
  %190 = vmatprep.mubr.bf16.mxu0 0
  %191 = vmatmul.mubr.bf16.gmra.mxu0 %v87
  %v192 = vpop.f32.mrf.mxu0
  %v193 = vadd.f32 %v52, %v192
  %v194 = vpop.f32.mrf.mxu0
  %v195 = vpop.f32.mrf.mxu0
  %v196 = vadd.f32 %v52, %v195
  %v197 = vpop.f32.mrf.mxu0
  %198 = vmatprep.mubr.bf16.mxu0 0
  %199 = vmatmul.mubr.bf16.gmra.mxu0 %v88
  %v200 = vpop.f32.mrf.mxu0
  %v201 = vadd.f32 %v52, %v200
  %v202 = vpop.f32.mrf.mxu0
  %v203 = vpop.f32.mrf.mxu0
  %v204 = vadd.f32 %v52, %v203
  %v205 = vpop.f32.mrf.mxu0
  %206 = vmatprep.mubr.bf16.mxu0 0
  %207 = vmatmul.mubr.bf16.gmra.mxu0 %v89
  %v208 = vpop.f32.mrf.mxu0
  %v209 = vadd.f32 %v52, %v208
  %v210 = vpop.f32.mrf.mxu0
  %v211 = vpop.f32.mrf.mxu0
  %v212 = vadd.f32 %v52, %v211
  %v213 = vpop.f32.mrf.mxu0
  %214 = vmatprep.mubr.bf16.mxu0 0
  %215 = vmatmul.mubr.bf16.gmra.mxu0 %v90
  %v216 = vpop.f32.mrf.mxu0
  %v217 = vadd.f32 %v52, %v216
  %v218 = vpop.f32.mrf.mxu0
  %v219 = vpop.f32.mrf.mxu0
  %v220 = vadd.f32 %v52, %v219
  %v221 = vpop.f32.mrf.mxu0
  %222 = vmatprep.mubr.bf16.mxu0 0
  %223 = vmatmul.mubr.bf16.gmra.mxu0 %v91
  %v224 = vpop.f32.mrf.mxu0
  %v225 = vadd.f32 %v52, %v224
  %v226 = vpop.f32.mrf.mxu0
  %v227 = vpop.f32.mrf.mxu0
  %v228 = vadd.f32 %v52, %v227
  %v229 = vpop.f32.mrf.mxu0
  %230 = vmatprep.mubr.bf16.mxu0 0
  %231 = vmatmul.mubr.bf16.gmra.mxu0 %v92
  %v232 = vpop.f32.mrf.mxu0
  %v233 = vadd.f32 %v52, %v232
  %v234 = vpop.f32.mrf.mxu0
  %v235 = vpop.f32.mrf.mxu0
  %v236 = vadd.f32 %v52, %v235
  %v237 = vpop.f32.mrf.mxu0
  %238 = vmatprep.mubr.bf16.mxu0 0
  %239 = vmatmul.mubr.bf16.gmra.mxu0 %v93
  %v240 = vpop.f32.mrf.mxu0
  %v241 = vadd.f32 %v52, %v240
  %v242 = vpop.f32.mrf.mxu0
  %v243 = vpop.f32.mrf.mxu0
  %v244 = vadd.f32 %v52, %v243
  %v245 = vpop.f32.mrf.mxu0
  %246 = vdwg.mxu0
  %v247 = vpack.c.bf16 %v188, %v185
  %v248 = vpack.c.bf16 %v196, %v193
  %v249 = vpack.c.bf16 %v204, %v201
  %v250 = vpack.c.bf16 %v212, %v209
  %v251 = vpack.c.bf16 %v220, %v217
  %v252 = vpack.c.bf16 %v228, %v225
  %v253 = vpack.c.bf16 %v236, %v233
  %v254 = vpack.c.bf16 %v244, %v241
  %v263 = vunpack.c.l.b16 %v247
  %v264 = vunpack.c.h.b16 %v247
  %v265 = vunpack.c.l.b16 %v248
  %v266 = vunpack.c.h.b16 %v248
  %v267 = vunpack.c.l.b16 %v249
  %v268 = vunpack.c.h.b16 %v249
  %v269 = vunpack.c.l.b16 %v250
  %v270 = vunpack.c.h.b16 %v250
  %v271 = vunpack.c.l.b16 %v251
  %v272 = vunpack.c.h.b16 %v251
  %v273 = vunpack.c.l.b16 %v252
  %v274 = vunpack.c.h.b16 %v252
  %v275 = vunpack.c.l.b16 %v253
  %v276 = vunpack.c.h.b16 %v253
  %v277 = vunpack.c.l.b16 %v254
  %v278 = vunpack.c.h.b16 %v254
  %v279 = vpack.c.b16 %v263, %v263
  %v280 = vpack.c.b16 %v264, %v264
  %v281 = vpack.c.b16 %v265, %v265
  %v282 = vpack.c.b16 %v266, %v266
  %v283 = vpack.c.b16 %v267, %v267
  %v284 = vpack.c.b16 %v268, %v268
  %v285 = vpack.c.b16 %v269, %v269
  %v286 = vpack.c.b16 %v270, %v270
  %v287 = vpack.c.b16 %v271, %v271
  %v288 = vpack.c.b16 %v272, %v272
  %v289 = vpack.c.b16 %v273, %v273
  %v290 = vpack.c.b16 %v274, %v274
  %v291 = vpack.c.b16 %v275, %v275
  %v292 = vpack.c.b16 %v276, %v276
  %v293 = vpack.c.b16 %v277, %v277
  %v294 = vpack.c.b16 %v278, %v278
  %311 = vst [vmem:[%s3] sm:$0xf] %v279
  %312 = vst [vmem:[%s3 + $0x4] sm:$0xf] %v280
  %313 = vst [vmem:[%s3 + $0x8] sm:$0xf] %v281
  %314 = vst [vmem:[%s3 + $0xc] sm:$0xf] %v282
  %315 = vst [vmem:[%s3 + $0x10] sm:$0xf] %v283
  %316 = vst [vmem:[%s3 + $0x14] sm:$0xf] %v284
  %317 = vst [vmem:[%s3 + $0x18] sm:$0xf] %v285
  %318 = vst [vmem:[%s3 + $0x1c] sm:$0xf] %v286
  %319 = vst [vmem:[%s3 + $0x20] sm:$0xf] %v287
  %320 = vst [vmem:[%s3 + $0x24] sm:$0xf] %v288
  %321 = vst [vmem:[%s3 + $0x28] sm:$0xf] %v289
  %322 = vst [vmem:[%s3 + $0x2c] sm:$0xf] %v290
  %323 = vst [vmem:[%s3 + $0x30] sm:$0xf] %v291
  %324 = vst [vmem:[%s3 + $0x34] sm:$0xf] %v292
  %325 = vst [vmem:[%s3 + $0x38] sm:$0xf] %v293
  %326 = vst [vmem:[%s3 + $0x3c] sm:$0xf] %v294
  // Predicated region
  $region14: #{gcn_forward.5} parent=0 // pred_check
    _
  $region15: #{gcn_forward.5} parent=0 // pred_check_branch
    %328 = sbr.rel (0) target = $region17
  $region16: #{gcn_forward.5} parent=0 // pred_region
    _
  $region17: #{gcn_forward.5} parent=0 // pred_fallthru
    _
  // Predicated region
  $region18: #{gcn_forward.5} parent=0 // pred_check
    _
  $region19: #{gcn_forward.5} parent=0 // pred_check_branch
    %330 = sbr.rel (0) target = $region21
  $region20: #{gcn_forward.5} parent=0 // pred_region
    _
  $region21: #{gcn_forward.5} parent=0 // pred_fallthru
    _

</llo_original>
